<compile_context>
chip_gen: v7x
topology: tpu7x:2x2x1
jax: 0.10.0
libtpu: 0.0.40
codegen_flags: <defaults>
</compile_context>

<pallas_src>
import functools

import jax
import jax.numpy as jnp
from jax import lax
from jax.experimental import pallas as pl
from jax.experimental.pallas import tpu as pltpu

_MiB = 1024 * 1024


def _round_up(x: int, m: int) -> int:
    return ((x + m - 1) // m) * m


def _cdiv(a: int, b: int) -> int:
    return -(-a // b)


def _sublane(dtype) -> int:
    # 8 rows for 4-byte, 16 for 2-byte, 32 for 1-byte dtypes.
    return max(8, 32 // jnp.dtype(dtype).itemsize)


# ---------------------------------------------------------------------------
# Shared kernel: o = x @ W.T with W in PyTorch (N, K) layout.
# Used by both the no-grid small path and the W-resident GEMV path.
# ---------------------------------------------------------------------------
def _xwt_kernel(x_ref, w_ref, o_ref):
    o_ref[...] = lax.dot_general(
        x_ref[...], w_ref[...],
        dimension_numbers=(((1,), (1,)), ((), ())),
        preferred_element_type=jnp.float32,
    ).astype(o_ref.dtype)


# ---------------------------------------------------------------------------
# Tiled path kernels (grid over M/N/K).  K tail is masked in-kernel when
# needed so no zero-padded copies of x / W ever touch HBM.
# ---------------------------------------------------------------------------
def _make_tiled_kernel(k_total: int, tk: int, mask_k: bool,
                       use_scratch: bool, single_k: bool):
    def dot_block(x_ref, w_ref):
        x = x_ref[...]
        w = w_ref[...]
        if mask_k:
            limit = k_total - pl.program_id(2) * tk
            x_ok = lax.broadcasted_iota(jnp.int32, x.shape, 1) < limit
            w_ok = lax.broadcasted_iota(jnp.int32, w.shape, 1) < limit
            x = jnp.where(x_ok, x, jnp.zeros_like(x))
            w = jnp.where(w_ok, w, jnp.zeros_like(w))
        return lax.dot_general(
            x, w, dimension_numbers=(((1,), (1,)), ((), ())),
            preferred_element_type=jnp.float32)

    if single_k:
        # One K block covering the full contraction: no accumulator needed.
        def kernel(x_ref, w_ref, o_ref):
            o_ref[...] = dot_block(x_ref, w_ref).astype(o_ref.dtype)
        return kernel

    if not use_scratch:
        # f32 output: accumulate directly into the revisited output block.
        def kernel(x_ref, w_ref, o_ref):
            @pl.when(pl.program_id(2) == 0)
            def _():
                o_ref[...] = jnp.zeros_like(o_ref)

            o_ref[...] += dot_block(x_ref, w_ref)
        return kernel

    # Non-f32 output with a K reduction: f32 VMEM accumulator scratch.
    def kernel(x_ref, w_ref, o_ref, acc_ref):
        @pl.when(pl.program_id(2) == 0)
        def _():
            acc_ref[...] = jnp.zeros_like(acc_ref)

        acc_ref[...] += dot_block(x_ref, w_ref)

        @pl.when(pl.program_id(2) == pl.num_programs(2) - 1)
        def _():
            o_ref[...] = acc_ref[...].astype(o_ref.dtype)
    return kernel


def _gemv_tile_m(batch: int, tm: int, sub: int) -> int:
    tm_g = min(tm, _round_up(batch, sub))
    # v7x megacore: make sure the parallel M grid has >= 2 blocks when the
    # batch allows it, so both TensorCores get work.
    if _cdiv(batch, tm_g) < 2 and batch >= 2 * sub:
        tm_g = _round_up(_cdiv(batch, 2), sub)
    return tm_g


@functools.partial(jax.jit, static_argnames=("tm", "tn", "tk", "path"))
def linear_coxph_forward(x, w, *, tm=512, tn=512, tk=512, path="auto"):
    """Forward pass of linearCoxPH_Regression: x @ w.T (no bias).

    Args:
      x: (batch, inputSize) activations.
      w: (outputSize, inputSize) weight (PyTorch nn.Linear layout, NOT
         transposed by the wrapper).
      tm/tn/tk: tile sizes for the tiled path.
      path: "auto" | "small" | "gemv" | "tiled" (mainly for testing).
    """
    batch, d_in = x.shape
    d_out, d_in_w = w.shape
    assert d_in == d_in_w, "inputSize mismatch between x and weight"

    out_dtype = x.dtype
    itemsize = jnp.dtype(x.dtype).itemsize
    sub = _sublane(x.dtype)

    total_bytes = itemsize * (batch * d_in + d_out * d_in + batch * d_out)
    w_bytes = itemsize * d_out * d_in

    if path == "auto":
        if total_bytes <= 4 * _MiB:
            path = "small"
        else:
            tm_g = _gemv_tile_m(batch, tm, sub)
            gemv_vmem = (2 * tm_g * d_in + 2 * tm_g * d_out) * itemsize + w_bytes
            path = "gemv" if gemv_vmem <= 40 * _MiB else "tiled"

    # --------------------- small: no grid, all in VMEM ---------------------
    if path == "small":
        return pl.pallas_call(
            _xwt_kernel,
            out_shape=jax.ShapeDtypeStruct((batch, d_out), out_dtype),
            in_specs=[
                pl.BlockSpec(memory_space=pltpu.MemorySpace.VMEM),
                pl.BlockSpec(memory_space=pltpu.MemorySpace.VMEM),
            ],
            out_specs=pl.BlockSpec(memory_space=pltpu.MemorySpace.VMEM),
            compiler_params=pltpu.CompilerParams(
                vmem_limit_bytes=32 * _MiB),
            cost_estimate=pl.CostEstimate(
                flops=2 * batch * d_out * d_in,
                transcendentals=0,
                bytes_accessed=total_bytes),
        )(x, w)

    # ------------- gemv: W resident in VMEM, x streams over M --------------
    if path == "gemv":
        tm_g = _gemv_tile_m(batch, tm, sub)
        grid = (_cdiv(batch, tm_g),)
        return pl.pallas_call(
            _xwt_kernel,
            out_shape=jax.ShapeDtypeStruct((batch, d_out), out_dtype),
            grid_spec=pltpu.PrefetchScalarGridSpec(
                num_scalar_prefetch=0,
                grid=grid,
                in_specs=[
                    pl.BlockSpec((tm_g, d_in), lambda i: (i, 0)),
                    pl.BlockSpec((d_out, d_in), lambda i: (0, 0)),
                ],
                out_specs=pl.BlockSpec((tm_g, d_out), lambda i: (i, 0)),
            ),
            compiler_params=pltpu.CompilerParams(
                dimension_semantics=("parallel",),
                vmem_limit_bytes=48 * _MiB),
            cost_estimate=pl.CostEstimate(
                flops=2 * batch * d_out * d_in,
                transcendentals=0,
                bytes_accessed=total_bytes),
        )(x, w)

    # --------------------------- tiled GEMM --------------------------------
    tm_e = min(tm, _round_up(batch, sub))
    tn_e = d_out if d_out <= tn else tn
    if d_in <= tk:
        tk_e, single_k, mask_k = d_in, True, False
    else:
        tk_e, single_k = tk, False
        mask_k = (d_in % tk != 0)

    grid = (_cdiv(batch, tm_e), _cdiv(d_out, tn_e), _cdiv(d_in, tk_e))
    use_scratch = (not single_k) and (jnp.dtype(out_dtype) != jnp.float32)

    kernel = _make_tiled_kernel(d_in, tk_e, mask_k, use_scratch, single_k)
    scratch = [pltpu.VMEM((tm_e, tn_e), jnp.float32)] if use_scratch else []

    return pl.pallas_call(
        kernel,
        out_shape=jax.ShapeDtypeStruct((batch, d_out), out_dtype),
        grid_spec=pltpu.PrefetchScalarGridSpec(
            num_scalar_prefetch=0,
            grid=grid,
            in_specs=[
                pl.BlockSpec((tm_e, tk_e), lambda i, j, k: (i, k)),
                pl.BlockSpec((tn_e, tk_e), lambda i, j, k: (j, k)),
            ],
            out_specs=pl.BlockSpec((tm_e, tn_e), lambda i, j, k: (i, j)),
            scratch_shapes=scratch,
        ),
        compiler_params=pltpu.CompilerParams(
            dimension_semantics=("parallel", "parallel", "arbitrary"),
            vmem_limit_bytes=48 * _MiB),
        cost_estimate=pl.CostEstimate(
            flops=2 * batch * d_out * d_in,
            transcendentals=0,
            bytes_accessed=itemsize * (batch * d_in * grid[1]
                                       + d_out * d_in * grid[0]
                                       + batch * d_out)),
    )(x, w)


if __name__ == "__main__":
    key = jax.random.PRNGKey(0)
    kx, kw, kx2, kw2, kx3, kw3, kx4, kw4 = jax.random.split(key, 8)
    HI = jax.lax.Precision.HIGHEST

    # --- Test 1: module-consistent CoxPH shapes (small / no-grid path) -----
    batch, input_size, output_size = 8, 32, 1
    x = jax.random.normal(kx, (batch, input_size), dtype=jnp.float32)
    bound = 1.0 / jnp.sqrt(jnp.float32(input_size))
    w = jax.random.uniform(kw, (output_size, input_size), dtype=jnp.float32,
                           minval=-bound, maxval=bound)
    out = jax.block_until_ready(linear_coxph_forward(x, w))
    ref = jnp.dot(x, w.T, precision=HI)
    assert out.shape == (batch, output_size)
    assert jnp.allclose(out, ref, atol=1e-5, rtol=1e-5), "small-path mismatch"

    # --- Test 2: GEMV path (W resident, x streamed over batch) -------------
    b2, di2, do2 = 640, 96, 1
    x2 = jax.random.normal(kx2, (b2, di2), dtype=jnp.float32)
    w2 = jax.random.normal(kw2, (do2, di2), dtype=jnp.float32) * 0.05
    out2 = jax.block_until_ready(linear_coxph_forward(x2, w2, path="gemv"))
    ref2 = jnp.dot(x2, w2.T, precision=HI)
    assert out2.shape == (b2, do2)
    assert jnp.allclose(out2, ref2, atol=1e-4, rtol=1e-4), "gemv-path mismatch"

    # --- Test 3: tiled path, multi-K with in-kernel K-tail mask (f32) ------
    b3, di3, do3 = 300, 200, 130
    x3 = jax.random.normal(kx3, (b3, di3), dtype=jnp.float32)
    w3 = jax.random.normal(kw3, (do3, di3), dtype=jnp.float32) * 0.05
    out3 = jax.block_until_ready(
        linear_coxph_forward(x3, w3, tk=128, path="tiled"))
    ref3 = jnp.dot(x3, w3.T, precision=HI)
    assert out3.shape == (b3, do3)
    assert jnp.allclose(out3, ref3, atol=1e-3, rtol=1e-4), "tiled-path mismatch"

    # --- Test 4: tiled path with f32 scratch accumulator (bf16 output) -----
    b4, di4, do4 = 300, 200, 64
    x4 = jax.random.normal(kx4, (b4, di4), dtype=jnp.float32).astype(jnp.bfloat16)
    w4 = (jax.random.normal(kw4, (do4, di4), dtype=jnp.float32) * 0.05
          ).astype(jnp.bfloat16)
    out4 = jax.block_until_ready(
        linear_coxph_forward(x4, w4, tk=128, path="tiled"))
    ref4 = jnp.dot(x4.astype(jnp.float32), w4.T.astype(jnp.float32),
                   precision=HI)
    assert out4.shape == (b4, do4)
    assert jnp.allclose(out4.astype(jnp.float32), ref4,
                        atol=2e-2, rtol=2e-2), "bf16 tiled-path mismatch"

    print("KERNEL_OK")
</pallas_src>

<mosaic_0001>
module attributes {stable_mosaic.version = 11 : i64} {
  func.func @_xwt_kernel(%arg0: memref<8x32xf32, #tpu.memory_space<vmem>>, %arg1: memref<1x32xf32, #tpu.memory_space<vmem>>, %arg2: memref<8x1xf32, #tpu.memory_space<vmem>>) attributes {dimension_semantics = [], scalar_prefetch = 0 : i64, scratch_operands = 0 : i64, tpu.core_type = #tpu.core_type<tc>} {
    %c0 = arith.constant 0 : index
    %c0_0 = arith.constant 0 : index
    %0 = vector.load %arg0[%c0, %c0_0] : memref<8x32xf32, #tpu.memory_space<vmem>>, vector<8x32xf32>
    %c0_1 = arith.constant 0 : index
    %c0_2 = arith.constant 0 : index
    %1 = vector.load %arg1[%c0_1, %c0_2] : memref<1x32xf32, #tpu.memory_space<vmem>>, vector<1x32xf32>
    %cst = arith.constant dense<0.000000e+00> : vector<8x1xf32>
    %2 = tpu.matmul %0, %1, %cst {dimension_numbers = #tpu.dot_dimension_numbers<[1], [1], [0], [0], [0, 0, 1, 0], [], []>} : vector<8x32xf32>, vector<1x32xf32>, vector<8x1xf32> -> vector<8x1xf32>
    %c0_3 = arith.constant 0 : index
    %c0_4 = arith.constant 0 : index
    %3 = vector.load %arg2[%c0_3, %c0_4] : memref<8x1xf32, #tpu.memory_space<vmem>>, vector<8x1xf32>
    tpu.vector_store %arg2[%c0_3, %c0_4], %2 {strides = array<i32>} : memref<8x1xf32, #tpu.memory_space<vmem>>, vector<8x1xf32>,
    return
  }
}

</mosaic_0001>

<llo_original>
// kernel: linear_coxph_forward.1
$region0: #{linear_coxph_forward.1}
  #allocation0 [shape = 'u32[]', space=smem, size = 0x4, offset = 0x4, fixed_abs, tag = 'smem constant byte address 0x4 - core index']
  #allocation1 [shape = 'u32[144,128]{1,0:T(1,128)}', space=vmem, size = 0x12000, scoped, tag = 'internal scratch']
  %s0 = inlined_call_operand.hbm [shape: f32[8,32], index: 0, kind: input, shape index: {}]
  %s1 = inlined_call_operand.vmem [shape: f32[1,32], index: 1, kind: input, shape index: {}]
  %s2 = inlined_call_operand.vmem [shape: f32[8,1], index: 2, kind: output, shape index: {}]
  %s3 = sld [smem:[#allocation0]]
  $region22: #{linear_coxph_forward.1} parent=0
    _
  %s5 = ssub.s32 1, %s3
  %s6 = scalar_select 0, %s5, %s3
  $region1: #{linear_coxph_forward.1} parent=0
    #allocation2 [shape = 'u8[4096]{0}', space=vmem, size = 0x1000, scoped, tag = 'input window, operand 0, single buffered']
    #allocation3 [shape = 's32[1]{0}', space=sflag, size = 0x4, scoped, tag = 'scoped memory for linear_coxph_forward.1']
    %7 = vsyncpa [#allocation3], 0
    // Predicated region
    $region2: #{linear_coxph_forward.1} parent=1 // pred_check
      _
    $region3: #{linear_coxph_forward.1} parent=1 // pred_check_branch
      %9 = sbr.rel (0) target = $region5
    $region4: #{linear_coxph_forward.1} parent=1 // pred_region
      %s11 = ssub.s32 128, 128
      %12 = vsyncadd [#allocation3], %s11
      %s14 = sshll.u32 [#allocation2], 4
      %s15 = int_to_ptr.vmem [resolvable:$true] %s14
      %17 = dma.hbm_to_vmem [thread:$0]  %s0, 128, %s15, [#allocation3]
    $region5: #{linear_coxph_forward.1} parent=1 // pred_fallthru
      _
    // Predicated region
    $region6: #{linear_coxph_forward.1} parent=1 // pred_check
      _
    $region7: #{linear_coxph_forward.1} parent=1 // pred_check_branch
      %19 = sbr.rel (0) target = $region9
    $region8: #{linear_coxph_forward.1} parent=1 // pred_region
      _
    $region9: #{linear_coxph_forward.1} parent=1 // pred_fallthru
      _
    // Predicated region
    $region10: #{linear_coxph_forward.1} parent=1 // pred_check
      _
    $region11: #{linear_coxph_forward.1} parent=1 // pred_check_branch
      %21 = sbr.rel (0) target = $region13
    $region12: #{linear_coxph_forward.1} parent=1 // pred_region
      %22 = dma.done [#allocation3], 128
    $region13: #{linear_coxph_forward.1} parent=1 // pred_fallthru
      _
    %v23 = vld [vmem:[#allocation2] sm:$0xff]
    %v24 = vld [vmem:[%s1] sm:$0x1]
    %v26 = vlaneseq
    %v27 = vshrl.u32 %v26, 7
    %v28 = vsub.s32 0, %v27
    %v29 = vrot.slane %v24, %v28
    %v31 = vmul.f32 %v23, %v29
    %vm32 = vcmask 261120
    %v33 = vsel %vm32, %v31, 0.0
    %34 = vadd.xlane.f32.xlu0 %v33
    %v35 = vpop.xlane.xlu0 %34
    %vm36 = vcmask 7168
    %37 = vst.msk [vmem:[%s2] sm:$0xff] %vm36, %v35
    // Predicated region
    $region14: #{linear_coxph_forward.1} parent=1 // pred_check
      _
    $region15: #{linear_coxph_forward.1} parent=1 // pred_check_branch
      %39 = sbr.rel (0) target = $region17
    $region16: #{linear_coxph_forward.1} parent=1 // pred_region
      _
    $region17: #{linear_coxph_forward.1} parent=1 // pred_fallthru
      _
    // Predicated region
    $region18: #{linear_coxph_forward.1} parent=1 // pred_check
      _
    $region19: #{linear_coxph_forward.1} parent=1 // pred_check_branch
      %41 = sbr.rel (0) target = $region21
    $region20: #{linear_coxph_forward.1} parent=1 // pred_region
      _
    $region21: #{linear_coxph_forward.1} parent=1 // pred_fallthru
      _
    %42 = vsyncpa [#allocation3], 1

</llo_original>
